<compile_context>
chip_gen: v7x
topology: tpu7x:2x2x1
jax: 0.10.0
libtpu: 0.0.40
codegen_flags: <defaults>
</compile_context>

<pallas_src>
import math
from functools import partial

import jax
import jax.numpy as jnp
from jax.experimental import pallas as pl
from jax.experimental.pallas import tpu as pltpu

_INV_SQRT2 = 1.0 / math.sqrt(2.0)


def _round_up(x, m):
    return (x + m - 1) // m * m


def _cdiv(a, b):
    return (a + b - 1) // b


def _vmem_budget_bytes():
    """Returns (physical per-core VMEM, usable budget ~= 75% of it).

    v5e/v6e (128 MiB) -> ~96 MiB budget; v7x (64 MiB per TC) -> ~48 MiB.
    Falls back to the conservative 64 MiB figure if the query fails.
    """
    try:
        cap = int(pltpu.get_tpu_info().vmem_capacity_bytes)
    except Exception:
        cap = 64 * 1024 * 1024
    return cap, (cap * 3) // 4


def _vmem_estimate(tile_m, tile_h, dim, x_bytes, mxu_bytes, multi):
    """Rough VMEM footprint: double-buffered BlockSpec slots + temporaries."""
    est = 2 * tile_m * dim * x_bytes          # x tile (2 pipeline buffers)
    est += 2 * tile_m * dim * x_bytes         # out tile
    est += 2 * dim * tile_h * mxu_bytes       # W1 slab
    est += 2 * tile_h * dim * mxu_bytes       # W2 slab
    est += 2 * (3 * dim + tile_h) * 4         # gamma / beta / b1 / b2
    est += 2 * tile_m * tile_h * 4            # (TM, TH) f32 hidden intermediate
    est += 2 * tile_m * dim * 4               # LayerNorm f32 temporaries
    if multi:
        est += tile_m * dim * mxu_bytes       # cached LayerNorm scratch
        est += tile_m * dim * 4               # f32 accumulator scratch
    return est


def _layernorm(x_f32, gamma_f32, beta_f32, eps):
    mean = jnp.mean(x_f32, axis=-1, keepdims=True)
    centered = x_f32 - mean
    var = jnp.mean(centered * centered, axis=-1, keepdims=True)
    return centered * jax.lax.rsqrt(var + eps) * gamma_f32 + beta_f32


def _gelu_exact(h):
    # exact erf-GELU, matches torch nn.GELU() default
    return 0.5 * h * (1.0 + jax.lax.erf(h * _INV_SQRT2))


# ---------------------------------------------------------------------------
# Fast path: whole hidden dim in one step; W1/W2 resident in VMEM (DMA'd once)
# ---------------------------------------------------------------------------
def _ffn_kernel_fused(x_ref, gamma_ref, beta_ref, w1_ref, b1_ref, w2_ref,
                      b2_ref, o_ref, *, eps, mxu_dtype):
    x = x_ref[...].astype(jnp.float32)
    xn = _layernorm(x, gamma_ref[...].astype(jnp.float32),
                    beta_ref[...].astype(jnp.float32), eps).astype(mxu_dtype)
    h = jnp.dot(xn, w1_ref[...], preferred_element_type=jnp.float32)
    h = _gelu_exact(h + b1_ref[...].astype(jnp.float32))
    y = jnp.dot(h.astype(mxu_dtype), w2_ref[...],
                preferred_element_type=jnp.float32)
    o_ref[...] = (y + b2_ref[...].astype(jnp.float32)).astype(o_ref.dtype)


# ---------------------------------------------------------------------------
# Fallback: hidden dim tiled on an inner "arbitrary" axis, f32 accumulator
# ---------------------------------------------------------------------------
def _ffn_kernel_multi(x_ref, gamma_ref, beta_ref, w1_ref, b1_ref, w2_ref,
                      b2_ref, o_ref, xn_ref, acc_ref, *, eps, mxu_dtype):
    j = pl.program_id(1)

    @pl.when(j == 0)
    def _():
        x = x_ref[...].astype(jnp.float32)
        xn = _layernorm(x, gamma_ref[...].astype(jnp.float32),
                        beta_ref[...].astype(jnp.float32), eps)
        xn_ref[...] = xn.astype(mxu_dtype)          # cached for all j steps
        # Seed accumulator with b2: removes the finalize read-add-write pass.
        acc_ref[...] = jnp.broadcast_to(b2_ref[...].astype(jnp.float32),
                                        acc_ref.shape)

    h = jnp.dot(xn_ref[...], w1_ref[...], preferred_element_type=jnp.float32)
    h = _gelu_exact(h + b1_ref[...].astype(jnp.float32))
    acc_ref[...] += jnp.dot(h.astype(mxu_dtype), w2_ref[...],
                            preferred_element_type=jnp.float32)

    @pl.when(j == pl.num_programs(1) - 1)
    def _():
        o_ref[...] = acc_ref[...].astype(o_ref.dtype)


def feed_forward(x, params, *, eps=1e-5, mxu_dtype=jnp.bfloat16,
                 force_tile_m=None, force_tile_h=None):
    """x: (batch, seq, dim) -> (batch, seq, dim). Dropout = identity (eval)."""
    gamma, beta, w1, b1, w2, b2 = params
    batch, seq, dim = x.shape
    hidden = w1.shape[1]
    M = batch * seq

    x_bytes = jnp.dtype(x.dtype).itemsize
    mxu_bytes = jnp.dtype(mxu_dtype).itemsize
    cap, budget = _vmem_budget_bytes()
    H_full = _round_up(hidden, 128)

    # --- tile_m: aim at each generation's compute/BW roofline ---------------
    tile_m_target = 1024 if cap >= 100 * 1024 * 1024 else 512
    tile_m = min(tile_m_target, _round_up(M, 16))       # 16: bf16 sublane pack
    if M >= 512 and _cdiv(M, tile_m) < 2:
        # keep >= 2 row tiles so both v7x TensorCores get "parallel" work
        tile_m = max(256, _round_up(_cdiv(M, 2), 16))
    if force_tile_m is not None:
        tile_m = min(_round_up(force_tile_m, 16), _round_up(M, 16))

    # --- tile_h: prefer a single hidden step (resident weights); otherwise
    # shrink tile_h first, then tile_m, to respect the per-generation budget.
    def _est(tm, th):
        return _vmem_estimate(tm, th, dim, x_bytes, mxu_bytes,
                              multi=(th < H_full))

    th_candidates = [H_full] + [t for t in (4096, 2048, 1024, 512, 256, 128)
                                if t < H_full]
    tile_h = None
    while tile_h is None:
        for th in th_candidates:
            if _est(tile_m, th) <= budget:
                tile_h = th
                break
        if tile_h is None:
            if tile_m <= 64:
                tile_h = th_candidates[-1]               # degrade gracefully
            else:
                tile_m = max(64, _round_up(tile_m // 2, 16))
    if force_tile_h is not None:
        tile_h = min(_round_up(force_tile_h, 128), H_full)

    single_step = tile_h >= H_full
    if single_step:
        H_pad = H_full
        tile_h = H_pad
    else:
        H_pad = _round_up(hidden, tile_h)
    M_pad = _round_up(M, tile_m)

    # --- operand prep (zero-pad rows / hidden cols; bf16 weights) -----------
    x2d = x.reshape(M, dim)
    if M_pad != M:
        x2d = jnp.pad(x2d, ((0, M_pad - M), (0, 0)))
    w1c = w1.astype(mxu_dtype)
    w2c = w2.astype(mxu_dtype)
    b1p = b1
    if H_pad != hidden:
        # padded hidden cols: GELU(0)=0 and zero W2 rows -> no contribution
        w1c = jnp.pad(w1c, ((0, 0), (0, H_pad - hidden)))
        w2c = jnp.pad(w2c, ((0, H_pad - hidden), (0, 0)))
        b1p = jnp.pad(b1, (0, H_pad - hidden))
    gamma2 = gamma.reshape(1, dim)
    beta2 = beta.reshape(1, dim)
    b1r = b1p.reshape(1, H_pad)
    b2r = b2.reshape(1, dim)

    est = _est(tile_m, tile_h)
    vmem_limit = int(min(max(2 * est, 32 * 1024 * 1024), budget))

    if single_step:
        grid = (M_pad // tile_m,)
        in_specs = [
            pl.BlockSpec((tile_m, dim), lambda i: (i, 0)),   # x rows
            pl.BlockSpec((1, dim), lambda i: (0, 0)),        # gamma
            pl.BlockSpec((1, dim), lambda i: (0, 0)),        # beta
            pl.BlockSpec((dim, H_pad), lambda i: (0, 0)),    # W1 (resident)
            pl.BlockSpec((1, H_pad), lambda i: (0, 0)),      # b1
            pl.BlockSpec((H_pad, dim), lambda i: (0, 0)),    # W2 (resident)
            pl.BlockSpec((1, dim), lambda i: (0, 0)),        # b2
        ]
        out_specs = pl.BlockSpec((tile_m, dim), lambda i: (i, 0))
        scratch_shapes = []
        kernel = partial(_ffn_kernel_fused, eps=eps, mxu_dtype=mxu_dtype)
        dims = ("parallel",)
    else:
        grid = (M_pad // tile_m, H_pad // tile_h)
        in_specs = [
            pl.BlockSpec((tile_m, dim), lambda i, j: (i, 0)),
            pl.BlockSpec((1, dim), lambda i, j: (0, 0)),
            pl.BlockSpec((1, dim), lambda i, j: (0, 0)),
            pl.BlockSpec((dim, tile_h), lambda i, j: (0, j)),
            pl.BlockSpec((1, tile_h), lambda i, j: (0, j)),
            pl.BlockSpec((tile_h, dim), lambda i, j: (j, 0)),
            pl.BlockSpec((1, dim), lambda i, j: (0, 0)),
        ]
        out_specs = pl.BlockSpec((tile_m, dim), lambda i, j: (i, 0))
        scratch_shapes = [
            pltpu.VMEM((tile_m, dim), mxu_dtype),    # cached LayerNorm output
            pltpu.VMEM((tile_m, dim), jnp.float32),  # f32 accumulator
        ]
        kernel = partial(_ffn_kernel_multi, eps=eps, mxu_dtype=mxu_dtype)
        dims = ("parallel", "arbitrary")

    out = pl.pallas_call(
        kernel,
        out_shape=jax.ShapeDtypeStruct((M_pad, dim), x.dtype),
        grid_spec=pltpu.PrefetchScalarGridSpec(
            num_scalar_prefetch=0,
            grid=grid,
            in_specs=in_specs,
            out_specs=out_specs,
            scratch_shapes=scratch_shapes,
        ),
        compiler_params=pltpu.CompilerParams(
            dimension_semantics=dims,
            vmem_limit_bytes=vmem_limit),
    )(x2d, gamma2, beta2, w1c, b1r, w2c, b2r)

    return out[:M].reshape(batch, seq, dim)


def init_params(key, dim, hidden_dim, dtype=jnp.float32):
    """Deterministic init mirroring nn.LayerNorm / nn.Linear defaults."""
    k1, k2, k3, k4 = jax.random.split(key, 4)
    gamma = jnp.ones((dim,), dtype)
    beta = jnp.zeros((dim,), dtype)
    # nn.Linear default: U(-1/sqrt(fan_in), 1/sqrt(fan_in)); stored as (in, out)
    # so the kernel computes x @ W (+ b), equivalent to x @ W_pt.T.
    lim1 = 1.0 / math.sqrt(dim)
    w1 = jax.random.uniform(k1, (dim, hidden_dim), dtype, -lim1, lim1)
    b1 = jax.random.uniform(k2, (hidden_dim,), dtype, -lim1, lim1)
    lim2 = 1.0 / math.sqrt(hidden_dim)
    w2 = jax.random.uniform(k3, (hidden_dim, dim), dtype, -lim2, lim2)
    b2 = jax.random.uniform(k4, (dim,), dtype, -lim2, lim2)
    return (gamma, beta, w1, b1, w2, b2)


def feed_forward_ref(x, params, eps=1e-5, mxu_dtype=None):
    """Pure-JAX reference; mxu_dtype mimics the kernel's bf16 matmul operands."""
    gamma, beta, w1, b1, w2, b2 = params
    xf = x.astype(jnp.float32)
    mean = jnp.mean(xf, axis=-1, keepdims=True)
    var = jnp.mean((xf - mean) ** 2, axis=-1, keepdims=True)
    xn = (xf - mean) * jax.lax.rsqrt(var + eps) * gamma + beta
    if mxu_dtype is not None:
        xn_m, w1_m = xn.astype(mxu_dtype), w1.astype(mxu_dtype)
    else:
        xn_m, w1_m = xn, w1
    h = jnp.dot(xn_m, w1_m, preferred_element_type=jnp.float32) + b1
    h = 0.5 * h * (1.0 + jax.lax.erf(h / jnp.sqrt(2.0)))
    if mxu_dtype is not None:
        h_m, w2_m = h.astype(mxu_dtype), w2.astype(mxu_dtype)
    else:
        h_m, w2_m = h, w2
    y = jnp.dot(h_m, w2_m, preferred_element_type=jnp.float32) + b2
    return y.astype(x.dtype)


if __name__ == "__main__":
    # Small, TPU-friendly shapes (dim multiple of 128 keeps the output lane-dense).
    batch, seq, dim, hidden_dim = 2, 16, 128, 256
    key = jax.random.PRNGKey(0)
    kx, kp = jax.random.split(key)
    x = jax.random.normal(kx, (batch, seq, dim), jnp.float32)
    params = init_params(kp, dim, hidden_dim)

    ref_bf16 = feed_forward_ref(x, params, mxu_dtype=jnp.bfloat16)
    ref_f32 = feed_forward_ref(x, params)

    # Default path: weights fit VMEM -> single hidden step, resident weights.
    out = jax.block_until_ready(feed_forward(x, params))
    assert out.shape == (batch, seq, dim)
    assert jnp.allclose(out, ref_bf16, atol=2e-3, rtol=2e-3), \
        "fused path: mismatch vs bf16-matmul reference"
    assert jnp.allclose(out, ref_f32, atol=3e-2, rtol=3e-2), \
        "fused path: mismatch vs f32 reference"

    # Tiled-hidden fallback path (f32 accumulator over inner 'arbitrary' axis).
    out_tiled = jax.block_until_ready(feed_forward(x, params, force_tile_h=128))
    assert jnp.allclose(out_tiled, ref_bf16, atol=2e-3, rtol=2e-3), \
        "tiled path: mismatch vs bf16-matmul reference"

    print("KERNEL_OK")
</pallas_src>

<mosaic_0001>
module attributes {stable_mosaic.version = 11 : i64} {
  func.func @_ffn_kernel_fused(%arg0: i32, %arg1: memref<32x128xf32, #tpu.memory_space<vmem>>, %arg2: memref<1x128xf32, #tpu.memory_space<vmem>>, %arg3: memref<1x128xf32, #tpu.memory_space<vmem>>, %arg4: memref<128x256xbf16, #tpu.memory_space<vmem>>, %arg5: memref<1x256xf32, #tpu.memory_space<vmem>>, %arg6: memref<256x128xbf16, #tpu.memory_space<vmem>>, %arg7: memref<1x128xf32, #tpu.memory_space<vmem>>, %arg8: memref<32x128xf32, #tpu.memory_space<vmem>>) attributes {dimension_semantics = [#tpu.dimension_semantics<parallel>], iteration_bounds = array<i64: 1>, scalar_prefetch = 0 : i64, scratch_operands = 0 : i64, tpu.core_type = #tpu.core_type<tc>, window_params = [{transform_indices = @transform_0, window_bounds = array<i64: 32, 128>}, {pipeline_mode = #tpu.pipeline_mode<synchronous>, transform_indices = @transform_1, window_bounds = array<i64: 1, 128>}, {pipeline_mode = #tpu.pipeline_mode<synchronous>, transform_indices = @transform_2, window_bounds = array<i64: 1, 128>}, {pipeline_mode = #tpu.pipeline_mode<synchronous>, transform_indices = @transform_3, window_bounds = array<i64: 128, 256>}, {pipeline_mode = #tpu.pipeline_mode<synchronous>, transform_indices = @transform_4, window_bounds = array<i64: 1, 256>}, {pipeline_mode = #tpu.pipeline_mode<synchronous>, transform_indices = @transform_5, window_bounds = array<i64: 256, 128>}, {pipeline_mode = #tpu.pipeline_mode<synchronous>, transform_indices = @transform_6, window_bounds = array<i64: 1, 128>}, {transform_indices = @transform_7, window_bounds = array<i64: 32, 128>}]} {
    %c0 = arith.constant 0 : index
    %c0_0 = arith.constant 0 : index
    %0 = vector.load %arg1[%c0, %c0_0] : memref<32x128xf32, #tpu.memory_space<vmem>>, vector<32x128xf32>
    %c0_1 = arith.constant 0 : index
    %c0_2 = arith.constant 0 : index
    %1 = vector.load %arg2[%c0_1, %c0_2] : memref<1x128xf32, #tpu.memory_space<vmem>>, vector<1x128xf32>
    %c0_3 = arith.constant 0 : index
    %c0_4 = arith.constant 0 : index
    %2 = vector.load %arg3[%c0_3, %c0_4] : memref<1x128xf32, #tpu.memory_space<vmem>>, vector<1x128xf32>
    %cst = arith.constant dense<0.000000e+00> : vector<32xf32>
    %3 = vector.multi_reduction <add>, %0, %cst [1] : vector<32x128xf32> to vector<32xf32>
    %4 = vector.shape_cast %3 : vector<32xf32> to vector<32x1xf32>
    %cst_5 = arith.constant 1.280000e+02 : f32
    %5 = vector.broadcast %cst_5 : f32 to vector<32x1xf32>
    %6 = arith.divf %4, %5 : vector<32x1xf32>
    %7 = vector.broadcast %6 : vector<32x1xf32> to vector<32x128xf32>
    %8 = arith.subf %0, %7 : vector<32x128xf32>
    %9 = arith.mulf %8, %8 : vector<32x128xf32>
    %cst_6 = arith.constant dense<0.000000e+00> : vector<32xf32>
    %10 = vector.multi_reduction <add>, %9, %cst_6 [1] : vector<32x128xf32> to vector<32xf32>
    %11 = vector.shape_cast %10 : vector<32xf32> to vector<32x1xf32>
    %cst_7 = arith.constant 1.280000e+02 : f32
    %12 = vector.broadcast %cst_7 : f32 to vector<32x1xf32>
    %13 = arith.divf %11, %12 : vector<32x1xf32>
    %cst_8 = arith.constant 9.99999974E-6 : f32
    %14 = vector.broadcast %cst_8 : f32 to vector<32x1xf32>
    %15 = arith.addf %13, %14 : vector<32x1xf32>
    %16 = math.rsqrt %15 : vector<32x1xf32>
    %17 = vector.broadcast %16 : vector<32x1xf32> to vector<32x128xf32>
    %18 = arith.mulf %8, %17 : vector<32x128xf32>
    %19 = vector.broadcast %1 : vector<1x128xf32> to vector<32x128xf32>
    %20 = arith.mulf %18, %19 : vector<32x128xf32>
    %21 = vector.broadcast %2 : vector<1x128xf32> to vector<32x128xf32>
    %22 = arith.addf %20, %21 : vector<32x128xf32>
    %23 = arith.truncf %22 : vector<32x128xf32> to vector<32x128xbf16>
    %c0_9 = arith.constant 0 : index
    %c0_10 = arith.constant 0 : index
    %24 = vector.load %arg4[%c0_9, %c0_10] : memref<128x256xbf16, #tpu.memory_space<vmem>>, vector<128x256xbf16>
    %cst_11 = arith.constant dense<0.000000e+00> : vector<32x256xf32>
    %25 = tpu.matmul %23, %24, %cst_11 {dimension_numbers = #tpu.dot_dimension_numbers<[1], [0], [0], [1], [0, 0, 1, 1], [], []>} : vector<32x128xbf16>, vector<128x256xbf16>, vector<32x256xf32> -> vector<32x256xf32>
    %c0_12 = arith.constant 0 : index
    %c0_13 = arith.constant 0 : index
    %26 = vector.load %arg5[%c0_12, %c0_13] : memref<1x256xf32, #tpu.memory_space<vmem>>, vector<1x256xf32>
    %27 = vector.broadcast %26 : vector<1x256xf32> to vector<32x256xf32>
    %28 = arith.addf %25, %27 : vector<32x256xf32>
    %cst_14 = arith.constant 5.000000e-01 : f32
    %29 = vector.broadcast %cst_14 : f32 to vector<32x256xf32>
    %30 = arith.mulf %29, %28 : vector<32x256xf32>
    %cst_15 = arith.constant 0.707106769 : f32
    %31 = vector.broadcast %cst_15 : f32 to vector<32x256xf32>
    %32 = arith.mulf %28, %31 : vector<32x256xf32>
    %33 = math.erf %32 : vector<32x256xf32>
    %cst_16 = arith.constant 1.000000e+00 : f32
    %34 = vector.broadcast %cst_16 : f32 to vector<32x256xf32>
    %35 = arith.addf %34, %33 : vector<32x256xf32>
    %36 = arith.mulf %30, %35 : vector<32x256xf32>
    %37 = arith.truncf %36 : vector<32x256xf32> to vector<32x256xbf16>
    %c0_17 = arith.constant 0 : index
    %c0_18 = arith.constant 0 : index
    %38 = vector.load %arg6[%c0_17, %c0_18] : memref<256x128xbf16, #tpu.memory_space<vmem>>, vector<256x128xbf16>
    %cst_19 = arith.constant dense<0.000000e+00> : vector<32x128xf32>
    %39 = tpu.matmul %37, %38, %cst_19 {dimension_numbers = #tpu.dot_dimension_numbers<[1], [0], [0], [1], [0, 0, 1, 1], [], []>} : vector<32x256xbf16>, vector<256x128xbf16>, vector<32x128xf32> -> vector<32x128xf32>
    %c0_20 = arith.constant 0 : index
    %c0_21 = arith.constant 0 : index
    %40 = vector.load %arg7[%c0_20, %c0_21] : memref<1x128xf32, #tpu.memory_space<vmem>>, vector<1x128xf32>
    %41 = vector.broadcast %40 : vector<1x128xf32> to vector<32x128xf32>
    %42 = arith.addf %39, %41 : vector<32x128xf32>
    %c0_22 = arith.constant 0 : index
    %c0_23 = arith.constant 0 : index
    %43 = vector.load %arg8[%c0_22, %c0_23] : memref<32x128xf32, #tpu.memory_space<vmem>>, vector<32x128xf32>
    tpu.vector_store %arg8[%c0_22, %c0_23], %42 {strides = array<i32>} : memref<32x128xf32, #tpu.memory_space<vmem>>, vector<32x128xf32>,
    return
  }
  func.func @transform_0(%arg0: i32) -> (i32, i32) {
    %c0_i32 = arith.constant 0 : i32
    %c0_i32_0 = arith.constant 0 : i32
    return %arg0, %c0_i32 : i32, i32
  }
  func.func @transform_1(%arg0: i32) -> (i32, i32) {
    %c0_i32 = arith.constant 0 : i32
    %c0_i32_0 = arith.constant 0 : i32
    %c0_i32_1 = arith.constant 0 : i32
    return %c0_i32, %c0_i32_0 : i32, i32
  }
  func.func @transform_2(%arg0: i32) -> (i32, i32) {
    %c0_i32 = arith.constant 0 : i32
    %c0_i32_0 = arith.constant 0 : i32
    %c0_i32_1 = arith.constant 0 : i32
    return %c0_i32, %c0_i32_0 : i32, i32
  }
  func.func @transform_3(%arg0: i32) -> (i32, i32) {
    %c0_i32 = arith.constant 0 : i32
    %c0_i32_0 = arith.constant 0 : i32
    %c0_i32_1 = arith.constant 0 : i32
    return %c0_i32, %c0_i32_0 : i32, i32
  }
  func.func @transform_4(%arg0: i32) -> (i32, i32) {
    %c0_i32 = arith.constant 0 : i32
    %c0_i32_0 = arith.constant 0 : i32
    %c0_i32_1 = arith.constant 0 : i32
    return %c0_i32, %c0_i32_0 : i32, i32
  }
  func.func @transform_5(%arg0: i32) -> (i32, i32) {
    %c0_i32 = arith.constant 0 : i32
    %c0_i32_0 = arith.constant 0 : i32
    %c0_i32_1 = arith.constant 0 : i32
    return %c0_i32, %c0_i32_0 : i32, i32
  }
  func.func @transform_6(%arg0: i32) -> (i32, i32) {
    %c0_i32 = arith.constant 0 : i32
    %c0_i32_0 = arith.constant 0 : i32
    %c0_i32_1 = arith.constant 0 : i32
    return %c0_i32, %c0_i32_0 : i32, i32
  }
  func.func @transform_7(%arg0: i32) -> (i32, i32) {
    %c0_i32 = arith.constant 0 : i32
    %c0_i32_0 = arith.constant 0 : i32
    return %arg0, %c0_i32 : i32, i32
  }
}

</mosaic_0001>

<llo_original>
// kernel: tpu_custom_call.1
$region0: #{tpu_custom_call.1}
  #allocation0 [shape = 'u32[]', space=smem, size = 0x4, offset = 0x4, fixed_abs, tag = 'smem constant byte address 0x4 - core index']
  #allocation1 [shape = 'u32[144,128]{1,0:T(1,128)}', space=vmem, size = 0x12000, scoped, tag = 'internal scratch']
  %s0 = inlined_call_operand.hbm [shape: f32[32,128], index: 0, kind: input, shape index: {}]
  %s1 = inlined_call_operand.vmem [shape: f32[1,128], index: 1, kind: input, shape index: {}]
  %s2 = inlined_call_operand.vmem [shape: f32[1,128], index: 2, kind: input, shape index: {}]
  %s3 = inlined_call_operand.hbm [shape: bf16[128,256], index: 3, kind: input, shape index: {}]
  %s4 = inlined_call_operand.vmem [shape: f32[1,256], index: 4, kind: input, shape index: {}]
  %s5 = inlined_call_operand.hbm [shape: bf16[256,128], index: 5, kind: input, shape index: {}]
  %s6 = inlined_call_operand.vmem [shape: f32[1,128], index: 6, kind: input, shape index: {}]
  %s7 = inlined_call_operand.hbm [shape: f32[32,128], index: 7, kind: output, shape index: {}]
  %s8 = sld [smem:[#allocation0]]
  $region50: #{tpu_custom_call.1} parent=0
    _
  %s10 = ssub.s32 1, %s8
  %s11 = scalar_select 0, %s10, %s8
  $region1: #{tpu_custom_call.1} parent=0
    #allocation2 [shape = 'u8[16384]{0}', space=vmem, size = 0x4000, scoped, tag = 'input window, operand 0, single buffered']
    #allocation3 [shape = 's32[1]{0}', space=sflag, size = 0x4, scoped, tag = 'scoped memory for tpu_custom_call.1']
    #allocation4 [shape = 's32[1]{0}', space=sflag, size = 0x4, scoped, tag = 'scoped memory for tpu_custom_call.1']
    #allocation5 [shape = 'u8[65536]{0}', space=vmem, size = 0x10000, scoped, tag = 'input window, operand 3, single buffered']
    #allocation6 [shape = 's32[1]{0}', space=sflag, size = 0x4, scoped, tag = 'scoped memory for tpu_custom_call.1']
    #allocation7 [shape = 'u8[65536]{0}', space=vmem, size = 0x10000, scoped, tag = 'input window, operand 5, single buffered']
    #allocation8 [shape = 'u8[16384]{0}', space=vmem, size = 0x4000, scoped, tag = 'output window, operand 0, single buffered']
    %12 = vsyncpa [#allocation3], 0
    %13 = vsyncpa [#allocation6], 0
    %14 = vsyncpa [#allocation4], 0
    // Predicated region
    $region2: #{tpu_custom_call.1} parent=1 // pred_check
      _
    $region3: #{tpu_custom_call.1} parent=1 // pred_check_branch
      %16 = sbr.rel (0) target = $region5
    $region4: #{tpu_custom_call.1} parent=1 // pred_region
      %s18 = ssub.s32 512, 512
      %19 = vsyncadd [#allocation3], %s18
      %s20 = sshll.u32 [#allocation2], 4
      %s21 = int_to_ptr.vmem [resolvable:$true] %s20
      %26 = dma.hbm_to_vmem [thread:$0]  %s0, 512, %s21, [#allocation3], 128, 128, 8
    $region5: #{tpu_custom_call.1} parent=1 // pred_fallthru
      _
    // Predicated region
    $region6: #{tpu_custom_call.1} parent=1 // pred_check
      _
    $region7: #{tpu_custom_call.1} parent=1 // pred_check_branch
      %28 = sbr.rel (0) target = $region9
    $region8: #{tpu_custom_call.1} parent=1 // pred_region
      _
    $region9: #{tpu_custom_call.1} parent=1 // pred_fallthru
      _
    // Predicated region
    $region10: #{tpu_custom_call.1} parent=1 // pred_check
      _
    $region11: #{tpu_custom_call.1} parent=1 // pred_check_branch
      %30 = sbr.rel (0) target = $region13
    $region12: #{tpu_custom_call.1} parent=1 // pred_region
      _
    $region13: #{tpu_custom_call.1} parent=1 // pred_fallthru
      _
    // Predicated region
    $region14: #{tpu_custom_call.1} parent=1 // pred_check
      _
    $region15: #{tpu_custom_call.1} parent=1 // pred_check_branch
      %32 = sbr.rel (0) target = $region17
    $region16: #{tpu_custom_call.1} parent=1 // pred_region
      %s34 = ssub.s32 2048, 2048
      %35 = vsyncadd [#allocation6], %s34
      %s36 = sshll.u32 [#allocation5], 4
      %s37 = int_to_ptr.vmem [resolvable:$true] %s36
      %42 = dma.hbm_to_vmem [thread:$0]  %s3, 2048, %s37, [#allocation6], 128, 128, 8
    $region17: #{tpu_custom_call.1} parent=1 // pred_fallthru
      _
    // Predicated region
    $region18: #{tpu_custom_call.1} parent=1 // pred_check
      _
    $region19: #{tpu_custom_call.1} parent=1 // pred_check_branch
      %44 = sbr.rel (0) target = $region21
    $region20: #{tpu_custom_call.1} parent=1 // pred_region
      _
    $region21: #{tpu_custom_call.1} parent=1 // pred_fallthru
      _
    // Predicated region
    $region22: #{tpu_custom_call.1} parent=1 // pred_check
      _
    $region23: #{tpu_custom_call.1} parent=1 // pred_check_branch
      %46 = sbr.rel (0) target = $region25
    $region24: #{tpu_custom_call.1} parent=1 // pred_region
      %s48 = ssub.s32 2048, 2048
      %49 = vsyncadd [#allocation6], %s48
      %s50 = sshll.u32 [#allocation7], 4
      %s51 = int_to_ptr.vmem [resolvable:$true] %s50
      %56 = dma.hbm_to_vmem [thread:$0]  %s5, 2048, %s51, [#allocation6], 64, 64, 4
    $region25: #{tpu_custom_call.1} parent=1 // pred_fallthru
      _
    // Predicated region
    $region26: #{tpu_custom_call.1} parent=1 // pred_check
      _
    $region27: #{tpu_custom_call.1} parent=1 // pred_check_branch
      %58 = sbr.rel (0) target = $region29
    $region28: #{tpu_custom_call.1} parent=1 // pred_region
      _
    $region29: #{tpu_custom_call.1} parent=1 // pred_fallthru
      _
    // Predicated region
    $region30: #{tpu_custom_call.1} parent=1 // pred_check
      _
    $region31: #{tpu_custom_call.1} parent=1 // pred_check_branch
      %60 = sbr.rel (0) target = $region33
    $region32: #{tpu_custom_call.1} parent=1 // pred_region
      %61 = dma.done [#allocation3], 512
    $region33: #{tpu_custom_call.1} parent=1 // pred_fallthru
      _
    // Predicated region
    $region34: #{tpu_custom_call.1} parent=1 // pred_check
      _
    $region35: #{tpu_custom_call.1} parent=1 // pred_check_branch
      %63 = sbr.rel (0) target = $region37
    $region36: #{tpu_custom_call.1} parent=1 // pred_region
      %64 = dma.done [#allocation6], 2048
    $region37: #{tpu_custom_call.1} parent=1 // pred_fallthru
      _
    // Predicated region
    $region38: #{tpu_custom_call.1} parent=1 // pred_check
      _
    $region39: #{tpu_custom_call.1} parent=1 // pred_check_branch
      %66 = sbr.rel (0) target = $region41
    $region40: #{tpu_custom_call.1} parent=1 // pred_region
      %67 = dma.done [#allocation6], 2048
    $region41: #{tpu_custom_call.1} parent=1 // pred_fallthru
      _
    %v69 = vld [vmem:[#allocation2] sm:$0xff]
    %v70 = vld [vmem:[#allocation2 + $0x8] sm:$0xff]
    %v71 = vld [vmem:[#allocation2 + $0x10] sm:$0xff]
    %v72 = vld [vmem:[#allocation2 + $0x18] sm:$0xff]
    %v73 = vld [vmem:[%s1] sm:$0x1]
    %v74 = vld [vmem:[%s2] sm:$0x1]
    %75 = vadd.xlane.f32.xlu0 %v69
    %v76 = vpop.xlane.xlu0 %75
    %77 = vadd.xlane.f32.xlu0 %v70
    %v78 = vpop.xlane.xlu0 %77
    %79 = vadd.xlane.f32.xlu0 %v71
    %v80 = vpop.xlane.xlu0 %79
    %81 = vadd.xlane.f32.xlu0 %v72
    %v82 = vpop.xlane.xlu0 %81
    %v83 = vrcp.pop 128.0
    %v84 = vmul.f32 %v76, %v83
    %v85 = vmul.f32 %v78, %v83
    %v86 = vmul.f32 %v80, %v83
    %v87 = vmul.f32 %v82, %v83
    %v88 = vsub.f32 %v69, %v84
    %v89 = vsub.f32 %v70, %v85
    %v90 = vsub.f32 %v71, %v86
    %v91 = vsub.f32 %v72, %v87
    %v92 = vmul.f32 %v88, %v88
    %v93 = vmul.f32 %v89, %v89
    %v94 = vmul.f32 %v90, %v90
    %v95 = vmul.f32 %v91, %v91
    %96 = vadd.xlane.f32.xlu0 %v92
    %v97 = vpop.xlane.xlu0 %96
    %98 = vadd.xlane.f32.xlu0 %v93
    %v99 = vpop.xlane.xlu0 %98
    %100 = vadd.xlane.f32.xlu0 %v94
    %v101 = vpop.xlane.xlu0 %100
    %102 = vadd.xlane.f32.xlu0 %v95
    %v103 = vpop.xlane.xlu0 %102
    %v104 = vmul.f32 %v97, %v83
    %v105 = vmul.f32 %v99, %v83
    %v106 = vmul.f32 %v101, %v83
    %v107 = vmul.f32 %v103, %v83
    %v108 = vadd.f32 %v104, 1e-05
    %v109 = vadd.f32 %v105, 1e-05
    %v110 = vadd.f32 %v106, 1e-05
    %v111 = vadd.f32 %v107, 1e-05
    %v112 = vrsqrt.pop %v108
    %v113 = vrsqrt.pop %v109
    %v114 = vrsqrt.pop %v110
    %v115 = vrsqrt.pop %v111
    %v116 = vmul.f32 %v88, %v112
    %v117 = vmul.f32 %v89, %v113
    %v118 = vmul.f32 %v90, %v114
    %v119 = vmul.f32 %v91, %v115
    %v121 = vlaneseq
    %v122 = vshrl.u32 %v121, 7
    %v123 = vsub.s32 0, %v122
    %v124 = vrot.slane %v73, %v123
    %v126 = vmul.f32 %v116, %v124
    %v127 = vmul.f32 %v117, %v124
    %v128 = vmul.f32 %v118, %v124
    %v129 = vmul.f32 %v119, %v124
    %v131 = vlaneseq
    %v132 = vshrl.u32 %v131, 7
    %v133 = vsub.s32 0, %v132
    %v134 = vrot.slane %v74, %v133
    %v136 = vadd.f32 %v126, %v134
    %v137 = vadd.f32 %v127, %v134
    %v138 = vadd.f32 %v128, %v134
    %v139 = vadd.f32 %v129, %v134
    %v140 = vpack.c.bf16 %v137, %v136
    %v141 = vpack.c.bf16 %v139, %v138
    %v142 = vld [vmem:[#allocation5] sm:$0xff]
    %v143 = vld [vmem:[#allocation5 + $0x8] sm:$0xff]
    %v144 = vld [vmem:[#allocation5 + $0x10] sm:$0xff]
    %v145 = vld [vmem:[#allocation5 + $0x18] sm:$0xff]
    %v146 = vld [vmem:[#allocation5 + $0x20] sm:$0xff]
    %v147 = vld [vmem:[#allocation5 + $0x28] sm:$0xff]
    %v148 = vld [vmem:[#allocation5 + $0x30] sm:$0xff]
    %v149 = vld [vmem:[#allocation5 + $0x38] sm:$0xff]
    %v150 = vld [vmem:[#allocation5 + $0x40] sm:$0xff]
    %v151 = vld [vmem:[#allocation5 + $0x48] sm:$0xff]
    %v152 = vld [vmem:[#allocation5 + $0x50] sm:$0xff]
    %v153 = vld [vmem:[#allocation5 + $0x58] sm:$0xff]
    %v154 = vld [vmem:[#allocation5 + $0x60] sm:$0xff]
    %v155 = vld [vmem:[#allocation5 + $0x68] sm:$0xff]
    %v156 = vld [vmem:[#allocation5 + $0x70] sm:$0xff]
    %v157 = vld [vmem:[#allocation5 + $0x78] sm:$0xff]
    %v158 = vld [vmem:[%s4] sm:$0x3]
    %v160 = vlaneseq
    %v161 = vshrl.u32 %v160, 7
    %v162 = vsub.s32 0, %v161
    %v163 = vrot.slane %v158, %v162
    %v164 = vlaneseq
    %v165 = vshrl.u32 %v164, 7
    %v166 = vsub.s32 1, %v165
    %v167 = vrot.slane %v158, %v166
    %v186 = vunpack.c.l.b16 %v142
    %v187 = vunpack.c.h.b16 %v142
    %v188 = vunpack.c.l.b16 %v143
    %v189 = vunpack.c.h.b16 %v143
    %v190 = vunpack.c.l.b16 %v144
    %v191 = vunpack.c.h.b16 %v144
    %v192 = vunpack.c.l.b16 %v145
    %v193 = vunpack.c.h.b16 %v145
    %v194 = vunpack.c.l.b16 %v146
    %v195 = vunpack.c.h.b16 %v146
    %v196 = vunpack.c.l.b16 %v147
    %v197 = vunpack.c.h.b16 %v147
    %v198 = vunpack.c.l.b16 %v148
    %v199 = vunpack.c.h.b16 %v148
    %v200 = vunpack.c.l.b16 %v149
    %v201 = vunpack.c.h.b16 %v149
    %v202 = vunpack.c.l.b16 %v150
    %v203 = vunpack.c.h.b16 %v150
    %v204 = vunpack.c.l.b16 %v151
    %v205 = vunpack.c.h.b16 %v151
    %v206 = vunpack.c.l.b16 %v152
    %v207 = vunpack.c.h.b16 %v152
    %v208 = vunpack.c.l.b16 %v153
    %v209 = vunpack.c.h.b16 %v153
    %v210 = vunpack.c.l.b16 %v154
    %v211 = vunpack.c.h.b16 %v154
    %v212 = vunpack.c.l.b16 %v155
    %v213 = vunpack.c.h.b16 %v155
    %v214 = vunpack.c.l.b16 %v156
    %v215 = vunpack.c.h.b16 %v156
    %v216 = vunpack.c.l.b16 %v157
    %v217 = vunpack.c.h.b16 %v157
    %v218 = vpack.c.b16 %v188, %v186
    %v219 = vpack.c.b16 %v189, %v187
    %v220 = vpack.c.b16 %v192, %v190
    %v221 = vpack.c.b16 %v193, %v191
    %v222 = vpack.c.b16 %v196, %v194
    %v223 = vpack.c.b16 %v197, %v195
    %v224 = vpack.c.b16 %v200, %v198
    %v225 = vpack.c.b16 %v201, %v199
    %v226 = vpack.c.b16 %v204, %v202
    %v227 = vpack.c.b16 %v205, %v203
    %v228 = vpack.c.b16 %v208, %v206
    %v229 = vpack.c.b16 %v209, %v207
    %v230 = vpack.c.b16 %v212, %v210
    %v231 = vpack.c.b16 %v213, %v211
    %v232 = vpack.c.b16 %v216, %v214
    %v233 = vpack.c.b16 %v217, %v215
    %250 = vmatprep.subr.bf16.mxu0 %v219
    %251 = vmatpush1.bf16.msra.mxu0 %v218
    %252 = vmatprep.subr.bf16.mxu0 %v221
    %253 = vmatpush1.bf16.msra.mxu0 %v220
    %254 = vmatprep.subr.bf16.mxu0 %v223
    %255 = vmatpush1.bf16.msra.mxu0 %v222
    %256 = vmatprep.subr.bf16.mxu0 %v225
    %257 = vmatpush1.bf16.msra.mxu0 %v224
    %258 = vmatprep.subr.bf16.mxu0 %v227
    %259 = vmatpush1.bf16.msra.mxu0 %v226
    %260 = vmatprep.subr.bf16.mxu0 %v229
    %261 = vmatpush1.bf16.msra.mxu0 %v228
    %262 = vmatprep.subr.bf16.mxu0 %v231
    %263 = vmatpush1.bf16.msra.mxu0 %v230
    %264 = vmatprep.subr.bf16.mxu0 %v233
    %265 = vmatpush1.bf16.msra.mxu0 %v232
    %266 = vmatprep.subr.bf16.mxu0 0
    %267 = vmatpush1.bf16.msra.mxu0 0
    %268 = vmatprep.subr.bf16.mxu0 0
    %269 = vmatpush1.bf16.msra.mxu0 0
    %270 = vmatprep.subr.bf16.mxu0 0
    %271 = vmatpush1.bf16.msra.mxu0 0
    %272 = vmatprep.subr.bf16.mxu0 0
    %273 = vmatpush1.bf16.msra.mxu0 0
    %274 = vmatprep.subr.bf16.mxu0 0
    %275 = vmatpush1.bf16.msra.mxu0 0
    %276 = vmatprep.subr.bf16.mxu0 0
    %277 = vmatpush1.bf16.msra.mxu0 0
    %278 = vmatprep.subr.bf16.mxu0 0
    %279 = vmatpush1.bf16.msra.mxu0 0
    %280 = vmatprep.subr.bf16.mxu0 0
    %281 = vmatpush1.bf16.msra.mxu0 0
    %282 = vmatprep.mubr.bf16.mxu0 0
    %283 = vmatmul.mubr.bf16.gmra.mrb[0].mxu0 %v140
    %v284 = vpop.f32.mrb[0].mxu0
    %v285 = vadd.f32 %v163, %v284
    %v286 = vpop.f32.mrb[0].mxu0
    %v287 = vadd.f32 %v167, %v286
    %v288 = vpop.f32.mrb[0].mxu0
    %v289 = vadd.f32 %v163, %v288
    %v290 = vpop.f32.mrb[0].mxu0
    %v291 = vadd.f32 %v167, %v290
    %292 = vmatprep.mubr.bf16.mxu0 0
    %293 = vmatmul.mubr.bf16.gmra.mrb[0].mxu0 %v141
    %v294 = vpop.f32.mrb[0].mxu0
    %v295 = vadd.f32 %v163, %v294
    %v296 = vpop.f32.mrb[0].mxu0
    %v297 = vadd.f32 %v167, %v296
    %v298 = vpop.f32.mrb[0].mxu0
    %v299 = vadd.f32 %v163, %v298
    %v300 = vpop.f32.mrb[0].mxu0
    %v301 = vadd.f32 %v167, %v300
    %302 = vdwg.mxu0
    %v303 = vmul.f32 %v285, 0.5
    %v304 = vmul.f32 %v287, 0.5
    %v305 = vmul.f32 %v289, 0.5
    %v306 = vmul.f32 %v291, 0.5
    %v307 = vmul.f32 %v295, 0.5
    %v308 = vmul.f32 %v297, 0.5
    %v309 = vmul.f32 %v299, 0.5
    %v310 = vmul.f32 %v301, 0.5
    %v311 = vmul.f32 %v285, 0.70710677
    %v312 = vmul.f32 %v287, 0.70710677
    %v313 = vmul.f32 %v289, 0.70710677
    %v314 = vmul.f32 %v291, 0.70710677
    %v315 = vmul.f32 %v295, 0.70710677
    %v316 = vmul.f32 %v297, 0.70710677
    %v317 = vmul.f32 %v299, 0.70710677
    %v318 = vmul.f32 %v301, 0.70710677
    %v319 = verf.f32.pop %v311
    %v320 = verf.f32.pop %v312
    %v321 = verf.f32.pop %v313
    %v322 = verf.f32.pop %v314
    %v323 = verf.f32.pop %v315
    %v324 = verf.f32.pop %v316
    %v325 = verf.f32.pop %v317
    %v326 = verf.f32.pop %v318
    %v327 = vadd.f32 %v319, 1.0
    %v328 = vadd.f32 %v320, 1.0
    %v329 = vadd.f32 %v321, 1.0
    %v330 = vadd.f32 %v322, 1.0
    %v331 = vadd.f32 %v323, 1.0
    %v332 = vadd.f32 %v324, 1.0
    %v333 = vadd.f32 %v325, 1.0
    %v334 = vadd.f32 %v326, 1.0
    %v335 = vmul.f32 %v303, %v327
    %v336 = vmul.f32 %v304, %v328
    %v337 = vmul.f32 %v305, %v329
    %v338 = vmul.f32 %v306, %v330
    %v339 = vmul.f32 %v307, %v331
    %v340 = vmul.f32 %v308, %v332
    %v341 = vmul.f32 %v309, %v333
    %v342 = vmul.f32 %v310, %v334
    %v343 = vpack.c.bf16 %v337, %v335
    %v344 = vpack.c.bf16 %v338, %v336
    %v345 = vpack.c.bf16 %v341, %v339
    %v346 = vpack.c.bf16 %v342, %v340
    %v347 = vld [vmem:[#allocation7] sm:$0xf]
    %v348 = vld [vmem:[#allocation7 + $0x4] sm:$0xf]
    %v349 = vld [vmem:[#allocation7 + $0x8] sm:$0xf]
    %v350 = vld [vmem:[#allocation7 + $0xc] sm:$0xf]
    %v351 = vld [vmem:[#allocation7 + $0x10] sm:$0xf]
    %v352 = vld [vmem:[#allocation7 + $0x14] sm:$0xf]
    %v353 = vld [vmem:[#allocation7 + $0x18] sm:$0xf]
    %v354 = vld [vmem:[#allocation7 + $0x1c] sm:$0xf]
    %v355 = vld [vmem:[#allocation7 + $0x20] sm:$0xf]
    %v356 = vld [vmem:[#allocation7 + $0x24] sm:$0xf]
    %v357 = vld [vmem:[#allocation7 + $0x28] sm:$0xf]
    %v358 = vld [vmem:[#allocation7 + $0x2c] sm:$0xf]
    %v359 = vld [vmem:[#allocation7 + $0x30] sm:$0xf]
    %v360 = vld [vmem:[#allocation7 + $0x34] sm:$0xf]
    %v361 = vld [vmem:[#allocation7 + $0x38] sm:$0xf]
    %v362 = vld [vmem:[#allocation7 + $0x3c] sm:$0xf]
    %v363 = vld [vmem:[#allocation7 + $0x40] sm:$0xf]
    %v364 = vld [vmem:[#allocation7 + $0x44] sm:$0xf]
    %v365 = vld [vmem:[#allocation7 + $0x48] sm:$0xf]
    %v366 = vld [vmem:[#allocation7 + $0x4c] sm:$0xf]
    %v367 = vld [vmem:[#allocation7 + $0x50] sm:$0xf]
    %v368 = vld [vmem:[#allocation7 + $0x54] sm:$0xf]
    %v369 = vld [vmem:[#allocation7 + $0x58] sm:$0xf]
    %v370 = vld [vmem:[#allocation7 + $0x5c] sm:$0xf]
    %v371 = vld [vmem:[#allocation7 + $0x60] sm:$0xf]
    %v372 = vld [vmem:[#allocation7 + $0x64] sm:$0xf]
    %v373 = vld [vmem:[#allocation7 + $0x68] sm:$0xf]
    %v374 = vld [vmem:[#allocation7 + $0x6c] sm:$0xf]
    %v375 = vld [vmem:[#allocation7 + $0x70] sm:$0xf]
    %v376 = vld [vmem:[#allocation7 + $0x74] sm:$0xf]
    %v377 = vld [vmem:[#allocation7 + $0x78] sm:$0xf]
    %v378 = vld [vmem:[#allocation7 + $0x7c] sm:$0xf]
    %v379 = vld [vmem:[%s6] sm:$0x1]
    %v381 = vlaneseq
    %v382 = vshrl.u32 %v381, 7
    %v383 = vsub.s32 0, %v382
    %v384 = vrot.slane %v379, %v383
    %v418 = vunpack.c.l.b16 %v347
    %v419 = vunpack.c.l.b16 %v348
    %v420 = vunpack.c.l.b16 %v349
    %v421 = vunpack.c.l.b16 %v350
    %v422 = vunpack.c.l.b16 %v351
    %v423 = vunpack.c.l.b16 %v352
    %v424 = vunpack.c.l.b16 %v353
    %v425 = vunpack.c.l.b16 %v354
    %v426 = vunpack.c.l.b16 %v355
    %v427 = vunpack.c.l.b16 %v356
    %v428 = vunpack.c.l.b16 %v357
    %v429 = vunpack.c.l.b16 %v358
    %v430 = vunpack.c.l.b16 %v359
    %v431 = vunpack.c.l.b16 %v360
    %v432 = vunpack.c.l.b16 %v361
    %v433 = vunpack.c.l.b16 %v362
    %v434 = vunpack.c.l.b16 %v363
    %v435 = vunpack.c.l.b16 %v364
    %v436 = vunpack.c.l.b16 %v365
    %v437 = vunpack.c.l.b16 %v366
    %v438 = vunpack.c.l.b16 %v367
    %v439 = vunpack.c.l.b16 %v368
    %v440 = vunpack.c.l.b16 %v369
    %v441 = vunpack.c.l.b16 %v370
    %v442 = vunpack.c.l.b16 %v371
    %v443 = vunpack.c.l.b16 %v372
    %v444 = vunpack.c.l.b16 %v373
    %v445 = vunpack.c.l.b16 %v374
    %v446 = vunpack.c.l.b16 %v375
    %v447 = vunpack.c.l.b16 %v376
    %v448 = vunpack.c.l.b16 %v377
    %v449 = vunpack.c.l.b16 %v378
    %v450 = vpack.c.b16 %v419, %v418
    %v451 = vpack.c.b16 %v421, %v420
    %v452 = vpack.c.b16 %v423, %v422
    %v453 = vpack.c.b16 %v425, %v424
    %v454 = vpack.c.b16 %v427, %v426
    %v455 = vpack.c.b16 %v429, %v428
    %v456 = vpack.c.b16 %v431, %v430
    %v457 = vpack.c.b16 %v433, %v432
    %v458 = vpack.c.b16 %v435, %v434
    %v459 = vpack.c.b16 %v437, %v436
    %v460 = vpack.c.b16 %v439, %v438
    %v461 = vpack.c.b16 %v441, %v440
    %v462 = vpack.c.b16 %v443, %v442
    %v463 = vpack.c.b16 %v445, %v444
    %v464 = vpack.c.b16 %v447, %v446
    %v465 = vpack.c.b16 %v449, %v448
    %482 = vmatprep.subr.bf16.mxu0 0
    %483 = vmatpush1.bf16.msra.mxu0 %v450
    %484 = vmatprep.subr.bf16.mxu0 0
    %485 = vmatpush1.bf16.msra.mxu0 %v451
    %486 = vmatprep.subr.bf16.mxu0 0
    %487 = vmatpush1.bf16.msra.mxu0 %v452
    %488 = vmatprep.subr.bf16.mxu0 0
    %489 = vmatpush1.bf16.msra.mxu0 %v453
    %490 = vmatprep.subr.bf16.mxu0 0
    %491 = vmatpush1.bf16.msra.mxu0 %v454
    %492 = vmatprep.subr.bf16.mxu0 0
    %493 = vmatpush1.bf16.msra.mxu0 %v455
    %494 = vmatprep.subr.bf16.mxu0 0
    %495 = vmatpush1.bf16.msra.mxu0 %v456
    %496 = vmatprep.subr.bf16.mxu0 0
    %497 = vmatpush1.bf16.msra.mxu0 %v457
    %498 = vmatprep.subr.bf16.mxu0 0
    %499 = vmatpush1.bf16.msra.mxu0 %v458
    %500 = vmatprep.subr.bf16.mxu0 0
    %501 = vmatpush1.bf16.msra.mxu0 %v459
    %502 = vmatprep.subr.bf16.mxu0 0
    %503 = vmatpush1.bf16.msra.mxu0 %v460
    %504 = vmatprep.subr.bf16.mxu0 0
    %505 = vmatpush1.bf16.msra.mxu0 %v461
    %506 = vmatprep.subr.bf16.mxu0 0
    %507 = vmatpush1.bf16.msra.mxu0 %v462
    %508 = vmatprep.subr.bf16.mxu0 0
    %509 = vmatpush1.bf16.msra.mxu0 %v463
    %510 = vmatprep.subr.bf16.mxu0 0
    %511 = vmatpush1.bf16.msra.mxu0 %v464
    %512 = vmatprep.subr.bf16.mxu0 0
    %513 = vmatpush1.bf16.msra.mxu0 %v465
    %514 = vmatprep.mubr.bf16.mxu0 %v344
    %515 = vmatmul.mubr.bf16.gmra.mrb[0].mxu0 %v343
    %v516 = vpop.f32.mrb[0].mxu0
    %v517 = vadd.f32 %v384, %v516
    %v518 = vpop.f32.mrb[0].mxu0
    %v519 = vpop.f32.mrb[0].mxu0
    %v520 = vadd.f32 %v384, %v519
    %v521 = vpop.f32.mrb[0].mxu0
    %522 = vmatprep.mubr.bf16.mxu0 %v346
    %523 = vmatmul.mubr.bf16.gmra.mrb[0].mxu0 %v345
    %v524 = vpop.f32.mrb[0].mxu0
    %v525 = vadd.f32 %v384, %v524
    %v526 = vpop.f32.mrb[0].mxu0
    %v527 = vpop.f32.mrb[0].mxu0
    %v528 = vadd.f32 %v384, %v527
    %v529 = vpop.f32.mrb[0].mxu0
    %530 = vdwg.mxu0
    %531 = vst [vmem:[#allocation8] sm:$0xff] %v517
    %532 = vst [vmem:[#allocation8 + $0x8] sm:$0xff] %v520
    %533 = vst [vmem:[#allocation8 + $0x10] sm:$0xff] %v525
    %534 = vst [vmem:[#allocation8 + $0x18] sm:$0xff] %v528
    // Predicated region
    $region42: #{tpu_custom_call.1} parent=1 // pred_check
      _
    $region43: #{tpu_custom_call.1} parent=1 // pred_check_branch
      %536 = sbr.rel (0) target = $region45
    $region44: #{tpu_custom_call.1} parent=1 // pred_region
      %s538 = ssub.s32 512, 512
      %539 = vsyncadd [#allocation4], %s538
      %s540 = sshll.u32 [#allocation8], 4
      %s541 = int_to_ptr.vmem [resolvable:$true] %s540
      %546 = dma.vmem_to_hbm [thread:$0]  %s541, 512, %s7, [#allocation4], 128, 128, 8
    $region45: #{tpu_custom_call.1} parent=1 // pred_fallthru
      _
    // Predicated region
    $region46: #{tpu_custom_call.1} parent=1 // pred_check
      _
    $region47: #{tpu_custom_call.1} parent=1 // pred_check_branch
      %548 = sbr.rel (0) target = $region49
    $region48: #{tpu_custom_call.1} parent=1 // pred_region
      %549 = dma.done [#allocation4], 512
    $region49: #{tpu_custom_call.1} parent=1 // pred_fallthru
      _
    %550 = vsyncpa [#allocation3], 1
    %551 = vsyncpa [#allocation6], 1
    %552 = vsyncpa [#allocation4], 1

</llo_original>
